<compile_context>
chip_gen: v6e
topology: v6e:2x2x1
jax: 0.10.0
libtpu: 0.0.40
codegen_flags: <defaults>
</compile_context>

<pallas_src>
import math

import jax
import jax.numpy as jnp
from jax import lax
from jax.experimental import pallas as pl
from jax.experimental.pallas import tpu as pltpu

_INV_SQRT2 = 1.0 / math.sqrt(2.0)


# --------------------------------------------------------------------------
# Kernels
# --------------------------------------------------------------------------
def _gelu_exact_f32(h):
    # exact GELU (erf form) in f32 — matches torch.nn.GELU() default.
    # TODO(synk): optional tanh-approx GELU (EUP-resident) if numerics allow.
    return 0.5 * h * (1.0 + lax.erf(h * _INV_SQRT2))


def _ffn_kernel_direct(x_ref, w1_ref, b1_ref, w2_ref, b2_ref, o_ref):
    """Accumulates directly into the revisited output block (f32 output or
    single F step).  Grid = (token tiles, F tiles); F is the reduction axis."""
    k = pl.program_id(1)

    h = jnp.dot(x_ref[...], w1_ref[...], preferred_element_type=jnp.float32)
    h = h + b1_ref[...].astype(jnp.float32)
    h = _gelu_exact_f32(h)
    # Cast back to the weight dtype before the second MXU dot (no-op for f32;
    # intended mixed precision when weights/inputs were cast to bf16).
    part = jnp.dot(h.astype(w2_ref.dtype), w2_ref[...],
                   preferred_element_type=jnp.float32)

    @pl.when(k == 0)
    def _first():
        o_ref[...] = (part + b2_ref[...].astype(jnp.float32)).astype(o_ref.dtype)

    @pl.when(k > 0)
    def _rest():
        o_ref[...] = (o_ref[...] + part).astype(o_ref.dtype)


def _ffn_kernel_acc(x_ref, w1_ref, b1_ref, w2_ref, b2_ref, o_ref, acc_ref):
    """Variant with an f32 VMEM accumulator (used only when the F axis has
    multiple steps AND the output dtype is narrower than f32)."""
    k = pl.program_id(1)

    @pl.when(k == 0)
    def _init():
        acc_ref[...] = jnp.zeros_like(acc_ref)

    h = jnp.dot(x_ref[...], w1_ref[...], preferred_element_type=jnp.float32)
    h = h + b1_ref[...].astype(jnp.float32)
    h = _gelu_exact_f32(h)
    acc_ref[...] += jnp.dot(h.astype(w2_ref.dtype), w2_ref[...],
                            preferred_element_type=jnp.float32)

    @pl.when(k == pl.num_programs(1) - 1)
    def _finalize():
        o_ref[...] = (acc_ref[...] + b2_ref[...].astype(jnp.float32)
                      ).astype(o_ref.dtype)


# --------------------------------------------------------------------------
# Tiling helpers
# --------------------------------------------------------------------------
def _round_up(n, m):
    return ((n + m - 1) // m) * m


def _pad_axis(a, axis, target):
    pad = target - a.shape[axis]
    if pad == 0:
        return a
    widths = [(0, 0)] * a.ndim
    widths[axis] = (0, pad)
    return jnp.pad(a, widths)


def _vmem_budget_bytes():
    """~80% of physical VMEM, always leaving >= 8 MiB headroom for Mosaic
    internal scratch.  v5e/v6e (128 MiB) -> ~102 MiB; v7x (64 MiB) -> ~51 MiB."""
    cap = None
    try:
        info = pltpu.get_tpu_info()
        cap = getattr(info, "vmem_capacity_bytes", None)
    except Exception:
        cap = None
    if not cap:
        cap = 64 << 20  # conservative fallback = v7x physical VMEM
    return int(min(cap - (8 << 20), int(0.8 * cap)))


def _per_step_bytes(tm, tf, Hp, isx, isw, iso):
    """Conservative VMEM footprint of one grid step (double-buffered blocks
    + f32 accumulator + f32 GELU intermediate)."""
    return (2 * tm * Hp * isx          # x tile
            + 2 * Hp * tf * isw        # W1 tile
            + 2 * tf * isw             # b1 tile
            + 2 * tf * Hp * isw        # W2 tile
            + 2 * Hp * isw             # b2
            + 2 * tm * Hp * iso        # out tile
            + tm * Hp * 4              # f32 accumulator (worst case)
            + tm * tf * 4)             # f32 GELU intermediate


def _tm_candidates(tm0):
    if tm0 <= 256:
        return [tm0]
    cands, t = [], tm0
    while t > 256:
        cands.append(t)
        t = max(256, t // 2)
    cands.append(256)
    return cands


def _choose_tiles(T, F, Hp, isx, isw, iso, tm_req, tf_req, budget):
    """Returns (tm_eff, tf_eff, Fp, fast_path)."""
    Ffull = _round_up(F, 128)
    tm0 = min(tm_req, _round_up(T, 8))

    def fits(tm, tf):
        return _per_step_bytes(tm, tf, Hp, isx, isw, iso) <= budget

    # 1) Weights-resident fast path: single F step -> each weight DMA'd once.
    for tm in _tm_candidates(tm0):
        if fits(tm, Ffull):
            return tm, Ffull, Ffull, True

    # 2) Streaming path: largest tf (multiple of 256) that fits the budget.
    tf_cands = [c for c in (1024, 768, 512, 256) if c <= max(256, tf_req)]
    if not tf_cands:
        tf_cands = [256]
    for tm in _tm_candidates(tm0):
        for tf in tf_cands:
            if fits(tm, tf):
                return tm, tf, _round_up(F, tf), False

    # 3) Fallback: smallest tiles (may still be tight; compiler will say so).
    tm = _tm_candidates(tm0)[-1]
    return tm, 256, _round_up(F, 256), False


# --------------------------------------------------------------------------
# Wrapper
# --------------------------------------------------------------------------
def ffn_pallas(x2d, w1, b1, w2, b2, *, tm=512, tf=1024, mxu_dtype=None):
    """x2d: [T, H]; w1: [H, F]; b1: [F]; w2: [F, H]; b2: [H] -> [T, H].

    mxu_dtype: if set (e.g. jnp.bfloat16), x/W1/W2 are cast to that dtype for
    the MXU dots (f32 accumulate); default None keeps exact input precision.
    """
    T, H = x2d.shape
    F = w1.shape[1]
    out_dtype = x2d.dtype

    op_dtype = jnp.dtype(mxu_dtype) if mxu_dtype is not None else jnp.dtype(x2d.dtype)
    isx = isw = op_dtype.itemsize
    iso = jnp.dtype(out_dtype).itemsize

    # ---- tile selection ---------------------------------------------------
    Hp = _round_up(H, 128)                       # lane-dense output stores
    budget = _vmem_budget_bytes()
    tm_eff, tf_eff, Fp, fast_path = _choose_tiles(
        T, F, Hp, isx, isw, iso, tm, tf, budget)
    Tp = _round_up(T, tm_eff)

    # Megacore friendliness (v7x, 2 TCs): in the weights-resident fast path a
    # single token tile idles one core — split small-T workloads into 2 tiles.
    if fast_path and Tp // tm_eff == 1 and T > 8:
        tm_half = _round_up((T + 1) // 2, 8)
        if tm_half < tm_eff:
            tm_eff = tm_half
            Tp = _round_up(T, tm_eff)

    n_k = Fp // tf_eff
    n_token_tiles = Tp // tm_eff

    # ---- zero-padding is exact: GELU(0)=0, padded W2 rows / columns are 0.
    xp = _pad_axis(_pad_axis(x2d, 1, Hp), 0, Tp)
    w1p = _pad_axis(_pad_axis(w1, 0, Hp), 1, Fp)
    b1p = _pad_axis(b1, 0, Fp).reshape(1, Fp)
    w2p = _pad_axis(_pad_axis(w2, 0, Fp), 1, Hp)
    b2p = _pad_axis(b2, 0, Hp).reshape(1, Hp)
    if mxu_dtype is not None:
        xp = xp.astype(op_dtype)
        w1p = w1p.astype(op_dtype)
        w2p = w2p.astype(op_dtype)
        # biases stay in their original (typically f32) dtype.

    # ---- kernel variant / scratch ------------------------------------------
    use_scratch = (n_k > 1) and (jnp.dtype(out_dtype) != jnp.dtype(jnp.float32))
    kernel = _ffn_kernel_acc if use_scratch else _ffn_kernel_direct
    scratch_shapes = ([pltpu.VMEM((tm_eff, Hp), jnp.float32)]
                      if use_scratch else [])

    # ---- cost estimate (counts weight re-streaming) -------------------------
    weight_fetches = 1 if n_k == 1 else n_token_tiles
    cost = pl.CostEstimate(
        flops=2 * 2 * Tp * Hp * Fp,          # two matmuls
        transcendentals=Tp * Fp,             # erf per hidden activation
        bytes_accessed=(xp.size * isx
                        + weight_fetches * (w1p.size + w2p.size) * isw
                        + (b1p.size * b1p.dtype.itemsize
                           + b2p.size * b2p.dtype.itemsize)
                        + Tp * Hp * iso),
    )

    out_padded = pl.pallas_call(
        kernel,
        out_shape=jax.ShapeDtypeStruct((Tp, Hp), out_dtype),
        grid_spec=pltpu.PrefetchScalarGridSpec(
            num_scalar_prefetch=0,
            grid=(n_token_tiles, n_k),
            in_specs=[
                pl.BlockSpec((tm_eff, Hp), lambda i, k: (i, 0)),    # x tile
                pl.BlockSpec((Hp, tf_eff), lambda i, k: (0, k)),    # W1 tile
                pl.BlockSpec((1, tf_eff), lambda i, k: (0, k)),     # b1 tile
                pl.BlockSpec((tf_eff, Hp), lambda i, k: (k, 0)),    # W2 tile
                pl.BlockSpec((1, Hp), lambda i, k: (0, 0)),         # b2
            ],
            out_specs=pl.BlockSpec((tm_eff, Hp), lambda i, k: (i, 0)),
            scratch_shapes=scratch_shapes,
        ),
        compiler_params=pltpu.CompilerParams(
            dimension_semantics=("parallel", "arbitrary"),
            vmem_limit_bytes=budget,
        ),
        cost_estimate=cost,
    )(xp, w1p, b1p, w2p, b2p)

    return out_padded[:T, :H]


def feed_forward_network(x, w1, b1, w2, b2, *, tm=512, tf=1024, mxu_dtype=None):
    """Applies Linear -> GELU -> Linear over the last dim of x (any leading dims)."""
    lead = x.shape[:-1]
    H = x.shape[-1]
    out2d = ffn_pallas(x.reshape(-1, H), w1, b1, w2, b2,
                       tm=tm, tf=tf, mxu_dtype=mxu_dtype)
    return out2d.reshape(*lead, H)


def ffn_reference(x, w1, b1, w2, b2):
    h = x @ w1 + b1
    h = 0.5 * h * (1.0 + lax.erf(h / math.sqrt(2.0)))
    return h @ w2 + b2


if __name__ == "__main__":
    batch, seq, hidden, ffn = 2, 8, 32, 64

    key = jax.random.PRNGKey(0)
    kx, k1w, k1b, k2w, k2b = jax.random.split(key, 5)

    # Deterministic params mimicking torch.nn.Linear init, stored as
    # [in_features, out_features] (transposed vs. torch's [out, in]).
    lim1 = 1.0 / math.sqrt(hidden)
    lim2 = 1.0 / math.sqrt(ffn)
    w1 = jax.random.uniform(k1w, (hidden, ffn), jnp.float32, -lim1, lim1)
    b1 = jax.random.uniform(k1b, (ffn,), jnp.float32, -lim1, lim1)
    w2 = jax.random.uniform(k2w, (ffn, hidden), jnp.float32, -lim2, lim2)
    b2 = jax.random.uniform(k2b, (hidden,), jnp.float32, -lim2, lim2)

    x = jax.random.normal(kx, (batch, seq, hidden), jnp.float32)

    out = feed_forward_network(x, w1, b1, w2, b2)
    jax.block_until_ready(out)

    ref = ffn_reference(x.reshape(-1, hidden), w1, b1, w2, b2).reshape(
        batch, seq, hidden)
    assert jnp.allclose(out, ref, atol=1e-4, rtol=1e-4), "mismatch vs reference"

    print("KERNEL_OK")
</pallas_src>

<mosaic_0001>
module attributes {stable_mosaic.version = 11 : i64} {
  func.func @_ffn_kernel_direct(%arg0: i32, %arg1: i32, %arg2: memref<8x128xf32, #tpu.memory_space<vmem>>, %arg3: memref<128x128xf32, #tpu.memory_space<vmem>>, %arg4: memref<1x128xf32, #tpu.memory_space<vmem>>, %arg5: memref<128x128xf32, #tpu.memory_space<vmem>>, %arg6: memref<1x128xf32, #tpu.memory_space<vmem>>, %arg7: memref<8x128xf32, #tpu.memory_space<vmem>>) attributes {dimension_semantics = [#tpu.dimension_semantics<parallel>, #tpu.dimension_semantics<arbitrary>], iteration_bounds = array<i64: 2, 1>, scalar_prefetch = 0 : i64, scratch_operands = 0 : i64, tpu.core_type = #tpu.core_type<tc>, window_params = [{transform_indices = @transform_0, window_bounds = array<i64: 8, 128>}, {transform_indices = @transform_1, window_bounds = array<i64: 128, 128>}, {transform_indices = @transform_2, window_bounds = array<i64: 1, 128>}, {transform_indices = @transform_3, window_bounds = array<i64: 128, 128>}, {pipeline_mode = #tpu.pipeline_mode<synchronous>, transform_indices = @transform_4, window_bounds = array<i64: 1, 128>}, {transform_indices = @transform_5, window_bounds = array<i64: 8, 128>}]} {
    %c0 = arith.constant 0 : index
    %c0_0 = arith.constant 0 : index
    %0 = vector.load %arg2[%c0, %c0_0] : memref<8x128xf32, #tpu.memory_space<vmem>>, vector<8x128xf32>
    %c0_1 = arith.constant 0 : index
    %c0_2 = arith.constant 0 : index
    %1 = vector.load %arg3[%c0_1, %c0_2] : memref<128x128xf32, #tpu.memory_space<vmem>>, vector<128x128xf32>
    %cst = arith.constant dense<0.000000e+00> : vector<8x128xf32>
    %2 = tpu.matmul %0, %1, %cst {dimension_numbers = #tpu.dot_dimension_numbers<[1], [0], [0], [1], [0, 0, 1, 1], [], []>} : vector<8x128xf32>, vector<128x128xf32>, vector<8x128xf32> -> vector<8x128xf32>
    %c0_3 = arith.constant 0 : index
    %c0_4 = arith.constant 0 : index
    %3 = vector.load %arg4[%c0_3, %c0_4] : memref<1x128xf32, #tpu.memory_space<vmem>>, vector<1x128xf32>
    %4 = vector.broadcast %3 : vector<1x128xf32> to vector<8x128xf32>
    %5 = arith.addf %2, %4 : vector<8x128xf32>
    %cst_5 = arith.constant 5.000000e-01 : f32
    %6 = vector.broadcast %cst_5 : f32 to vector<8x128xf32>
    %7 = arith.mulf %6, %5 : vector<8x128xf32>
    %cst_6 = arith.constant 0.707106769 : f32
    %8 = vector.broadcast %cst_6 : f32 to vector<8x128xf32>
    %9 = arith.mulf %5, %8 : vector<8x128xf32>
    %10 = math.erf %9 : vector<8x128xf32>
    %cst_7 = arith.constant 1.000000e+00 : f32
    %11 = vector.broadcast %cst_7 : f32 to vector<8x128xf32>
    %12 = arith.addf %11, %10 : vector<8x128xf32>
    %13 = arith.mulf %7, %12 : vector<8x128xf32>
    %c0_8 = arith.constant 0 : index
    %c0_9 = arith.constant 0 : index
    %14 = vector.load %arg5[%c0_8, %c0_9] : memref<128x128xf32, #tpu.memory_space<vmem>>, vector<128x128xf32>
    %cst_10 = arith.constant dense<0.000000e+00> : vector<8x128xf32>
    %15 = tpu.matmul %13, %14, %cst_10 {dimension_numbers = #tpu.dot_dimension_numbers<[1], [0], [0], [1], [0, 0, 1, 1], [], []>} : vector<8x128xf32>, vector<128x128xf32>, vector<8x128xf32> -> vector<8x128xf32>
    %c0_i32 = arith.constant 0 : i32
    %16 = arith.cmpi eq, %arg1, %c0_i32 : i32
    %17 = arith.extui %16 : i1 to i32
    %c0_i32_11 = arith.constant 0 : i32
    %18 = arith.cmpi ne, %17, %c0_i32_11 : i32
    scf.if %18 {
      %c0_14 = arith.constant 0 : index
      %c0_15 = arith.constant 0 : index
      %22 = vector.load %arg6[%c0_14, %c0_15] : memref<1x128xf32, #tpu.memory_space<vmem>>, vector<1x128xf32>
      %23 = vector.broadcast %22 : vector<1x128xf32> to vector<8x128xf32>
      %24 = arith.addf %15, %23 : vector<8x128xf32>
      %c0_16 = arith.constant 0 : index
      %c0_17 = arith.constant 0 : index
      %25 = vector.load %arg7[%c0_16, %c0_17] : memref<8x128xf32, #tpu.memory_space<vmem>>, vector<8x128xf32>
      tpu.vector_store %arg7[%c0_16, %c0_17], %24 {strides = array<i32>} : memref<8x128xf32, #tpu.memory_space<vmem>>, vector<8x128xf32>,
    } else {
    }
    %c0_i32_12 = arith.constant 0 : i32
    %19 = arith.cmpi sgt, %arg1, %c0_i32_12 : i32
    %20 = arith.extui %19 : i1 to i32
    %c0_i32_13 = arith.constant 0 : i32
    %21 = arith.cmpi ne, %20, %c0_i32_13 : i32
    scf.if %21 {
      %c0_14 = arith.constant 0 : index
      %c0_15 = arith.constant 0 : index
      %22 = vector.load %arg7[%c0_14, %c0_15] : memref<8x128xf32, #tpu.memory_space<vmem>>, vector<8x128xf32>
      %23 = arith.addf %22, %15 : vector<8x128xf32>
      %c0_16 = arith.constant 0 : index
      %c0_17 = arith.constant 0 : index
      %24 = vector.load %arg7[%c0_16, %c0_17] : memref<8x128xf32, #tpu.memory_space<vmem>>, vector<8x128xf32>
      tpu.vector_store %arg7[%c0_16, %c0_17], %23 {strides = array<i32>} : memref<8x128xf32, #tpu.memory_space<vmem>>, vector<8x128xf32>,
    } else {
    }
    return
  }
  func.func @transform_0(%arg0: i32, %arg1: i32) -> (i32, i32) {
    %c0_i32 = arith.constant 0 : i32
    %c0_i32_0 = arith.constant 0 : i32
    return %arg0, %c0_i32 : i32, i32
  }
  func.func @transform_1(%arg0: i32, %arg1: i32) -> (i32, i32) {
    %c0_i32 = arith.constant 0 : i32
    %c0_i32_0 = arith.constant 0 : i32
    return %c0_i32, %arg1 : i32, i32
  }
  func.func @transform_2(%arg0: i32, %arg1: i32) -> (i32, i32) {
    %c0_i32 = arith.constant 0 : i32
    %c0_i32_0 = arith.constant 0 : i32
    return %c0_i32, %arg1 : i32, i32
  }
  func.func @transform_3(%arg0: i32, %arg1: i32) -> (i32, i32) {
    %c0_i32 = arith.constant 0 : i32
    %c0_i32_0 = arith.constant 0 : i32
    return %arg1, %c0_i32 : i32, i32
  }
  func.func @transform_4(%arg0: i32, %arg1: i32) -> (i32, i32) {
    %c0_i32 = arith.constant 0 : i32
    %c0_i32_0 = arith.constant 0 : i32
    %c0_i32_1 = arith.constant 0 : i32
    return %c0_i32, %c0_i32_0 : i32, i32
  }
  func.func @transform_5(%arg0: i32, %arg1: i32) -> (i32, i32) {
    %c0_i32 = arith.constant 0 : i32
    %c0_i32_0 = arith.constant 0 : i32
    return %arg0, %c0_i32 : i32, i32
  }
}

</mosaic_0001>

<llo_original>
// kernel: tpu_custom_call.1
$region0: #{tpu_custom_call.1}
  #allocation0 [shape = 'u32[]', space=smem, size = 0x4, offset = 0x4, fixed_abs, tag = 'smem constant byte address 0x4 - core index']
  #allocation1 [shape = 'u32[144,128]{1,0:T(1,128)}', space=vmem, size = 0x12000, scoped, tag = 'internal scratch']
  %s0 = inlined_call_operand.hbm [shape: f32[16,128], index: 0, kind: input, shape index: {}]
  %s1 = inlined_call_operand.hbm [shape: f32[128,128], index: 1, kind: input, shape index: {}]
  %s2 = inlined_call_operand.vmem [shape: f32[1,128], index: 2, kind: input, shape index: {}]
  %s3 = inlined_call_operand.hbm [shape: f32[128,128], index: 3, kind: input, shape index: {}]
  %s4 = inlined_call_operand.vmem [shape: f32[1,128], index: 4, kind: input, shape index: {}]
  %s5 = inlined_call_operand.hbm [shape: f32[16,128], index: 5, kind: output, shape index: {}]
  %s6 = sld [smem:[#allocation0]]
  $region73: #{tpu_custom_call.1} parent=0
    _
  %s8 = ssub.s32 1, %s6
  %s9 = scalar_select 0, %s8, %s6
  $region1: #{tpu_custom_call.1} parent=0
    #allocation2 [shape = 'u8[8192]{0}', space=vmem, size = 0x2000, scoped, tag = 'input window, operand 0']
    #allocation3 [shape = 's32[2]{0}', space=sflag, size = 0x8, scoped, tag = 'scoped memory for tpu_custom_call.1']
    #allocation4 [shape = 's32[2]{0}', space=sflag, size = 0x8, scoped, tag = 'scoped memory for tpu_custom_call.1']
    #allocation5 [shape = 'u8[65536]{0}', space=vmem, size = 0x10000, scoped, tag = 'input window, operand 1, single buffered']
    #allocation6 [shape = 's32[1]{0}', space=sflag, size = 0x4, scoped, tag = 'scoped memory for tpu_custom_call.1']
    #allocation7 [shape = 'u8[65536]{0}', space=vmem, size = 0x10000, scoped, tag = 'input window, operand 3, single buffered']
    #allocation8 [shape = 'u8[8192]{0}', space=vmem, size = 0x2000, scoped, tag = 'output window, operand 0']
    %10 = vsyncpa [#allocation3], 0
    %s11 = scalar_lea.sflag [#allocation3], 1
    %12 = vsyncpa %s11, 0
    %13 = vsyncpa [#allocation6], 0
    %14 = vsyncpa [#allocation4], 0
    %s15 = scalar_lea.sflag [#allocation4], 1
    %16 = vsyncpa %s15, 0
    loop: start=0, step=1, limit=4
    $region2: #{tpu_custom_call.1} parent=1 // loop_pre_header
      _
    $region3: #{tpu_custom_call.1} parent=1 // loop_header
      %s18 = sphi 0, %s22
      %p19 = scmp.ge.s32.totalorder %s18, 4
      %s25 = sphi 0, %s37
      %s26 = sphi 0, %s33
      %s27 = sphi 0, %s25
      %s28 = sphi 0, %s26
      %s29 = sphi 0, %s27
      %s30 = sphi 0, %s28
      %s40 = sphi 0, %s42
      %s43 = sphi 0, %s40
      %s44 = sphi 0, %s43
      %s60 = sphi 0, %s44
      %s66 = sphi 0, %s68
      %s69 = sphi 0, %s66
      %s70 = sphi 0, %s69
      %s86 = sphi 0, %s70
      %s92 = sphi 0, %s94
      %s95 = sphi 0, %s92
      %s96 = sphi 0, %s95
      %s112 = sphi 0, %s96
      %s118 = sphi 0, %s120
      %s121 = sphi 0, %s118
      %s122 = sphi 0, %s121
      %s138 = sphi 0, %s122
      %s142 = sphi 0, %s142
      %s144 = sphi 0, %s142
      %s145 = sphi 0, %s144
      %s159 = sphi 0, %s145
      %s165 = sphi 0, %s167
      %s168 = sphi 0, %s165
      %s169 = sphi 0, %s168
      %s185 = sphi 0, %s169
    $region4: #{tpu_custom_call.1} parent=1 // loop_header_branch
      %21 = sbr.rel (%p19) target = $region8
    $region5: #{tpu_custom_call.1} parent=1 // loop_body
      %s23 = ssub.s32 %s18, 1
      %s24 = ssub.s32 %s18, 2
      %s31 = sadd.s32 1, %s26
      %p32 = scmp.ge.s32.totalorder %s31, 1
      %s33 = scalar_select %p32, 0, %s31
      %s34 = sadd.s32 1, %s25
      %s35 = scalar_select %p32, %s34, %s25
      %p36 = scmp.ge.s32.totalorder %s35, 2
      %s37 = scalar_select %p36, 0, %s35
      %s38 = ssub.s32 %s25, %s37
      %p39 = scmp.eq.s32.totalorder %s38, 0
      %s41 = sadd.s32 %s40, 1
      %s42 = scalar_select %p39, %s40, %s41
      %p45 = pneg %p39
      %p46 = scmp.eq.s32.totalorder %s18, 1
      %p47 = por %p45, %p46
      %p48 = scmp.ne.s32.totalorder %s40, %s43
      %p49 = scmp.eq.s32.totalorder %s18, 0
      %p50 = por %p48, %p49
      %p51 = scmp.ne.s32.totalorder %s40, %s43
      %p52 = scmp.eq.s32.totalorder %s23, 1
      %p53 = por %p51, %p52
      %p54 = scmp.ne.s32.totalorder %s43, %s44
      %p55 = scmp.eq.s32.totalorder %s23, 0
      %p56 = por %p54, %p55
      %p57 = scmp.ne.s32.totalorder %s43, %s44
      %p58 = scmp.eq.s32.totalorder %s24, 1
      %p59 = por %p57, %p58
      %p61 = scmp.ne.s32.totalorder %s44, %s60
      %p62 = scmp.eq.s32.totalorder %s24, 0
      %p63 = por %p61, %p62
      %s64 = ssub.s32 %s26, %s33
      %p65 = scmp.eq.s32.totalorder %s64, 0
      %s67 = sadd.s32 %s66, 1
      %s68 = scalar_select %p65, %s66, %s67
      %p71 = pneg %p65
      %p72 = scmp.eq.s32.totalorder %s18, 1
      %p73 = por %p71, %p72
      %p74 = scmp.ne.s32.totalorder %s66, %s69
      %p75 = scmp.eq.s32.totalorder %s18, 0
      %p76 = por %p74, %p75
      %p77 = scmp.ne.s32.totalorder %s66, %s69
      %p78 = scmp.eq.s32.totalorder %s23, 1
      %p79 = por %p77, %p78
      %p80 = scmp.ne.s32.totalorder %s69, %s70
      %p81 = scmp.eq.s32.totalorder %s23, 0
      %p82 = por %p80, %p81
      %p83 = scmp.ne.s32.totalorder %s69, %s70
      %p84 = scmp.eq.s32.totalorder %s24, 1
      %p85 = por %p83, %p84
      %p87 = scmp.ne.s32.totalorder %s70, %s86
      %p88 = scmp.eq.s32.totalorder %s24, 0
      %p89 = por %p87, %p88
      %s90 = ssub.s32 %s26, %s33
      %p91 = scmp.eq.s32.totalorder %s90, 0
      %s93 = sadd.s32 %s92, 1
      %s94 = scalar_select %p91, %s92, %s93
      %p97 = pneg %p91
      %p98 = scmp.eq.s32.totalorder %s18, 1
      %p99 = por %p97, %p98
      %p100 = scmp.ne.s32.totalorder %s92, %s95
      %p101 = scmp.eq.s32.totalorder %s18, 0
      %p102 = por %p100, %p101
      %p103 = scmp.ne.s32.totalorder %s92, %s95
      %p104 = scmp.eq.s32.totalorder %s23, 1
      %p105 = por %p103, %p104
      %p106 = scmp.ne.s32.totalorder %s95, %s96
      %p107 = scmp.eq.s32.totalorder %s23, 0
      %p108 = por %p106, %p107
      %p109 = scmp.ne.s32.totalorder %s95, %s96
      %p110 = scmp.eq.s32.totalorder %s24, 1
      %p111 = por %p109, %p110
      %p113 = scmp.ne.s32.totalorder %s96, %s112
      %p114 = scmp.eq.s32.totalorder %s24, 0
      %p115 = por %p113, %p114
      %s116 = ssub.s32 %s26, %s33
      %p117 = scmp.eq.s32.totalorder %s116, 0
      %s119 = sadd.s32 %s118, 1
      %s120 = scalar_select %p117, %s118, %s119
      %p123 = pneg %p117
      %p124 = scmp.eq.s32.totalorder %s18, 1
      %p125 = por %p123, %p124
      %p126 = scmp.ne.s32.totalorder %s118, %s121
      %p127 = scmp.eq.s32.totalorder %s18, 0
      %p128 = por %p126, %p127
      %p129 = scmp.ne.s32.totalorder %s118, %s121
      %p130 = scmp.eq.s32.totalorder %s23, 1
      %p131 = por %p129, %p130
      %p132 = scmp.ne.s32.totalorder %s121, %s122
      %p133 = scmp.eq.s32.totalorder %s23, 0
      %p134 = por %p132, %p133
      %p135 = scmp.ne.s32.totalorder %s121, %s122
      %p136 = scmp.eq.s32.totalorder %s24, 1
      %p137 = por %p135, %p136
      %p139 = scmp.ne.s32.totalorder %s122, %s138
      %p140 = scmp.eq.s32.totalorder %s24, 0
      %p141 = por %p139, %p140
      %s143 = sadd.s32 %s142, 1
      %p146 = scmp.eq.s32.totalorder %s18, 1
      %p147 = scmp.ne.s32.totalorder %s142, %s144
      %p148 = scmp.eq.s32.totalorder %s18, 0
      %p149 = por %p147, %p148
      %p150 = scmp.ne.s32.totalorder %s142, %s144
      %p151 = scmp.eq.s32.totalorder %s23, 1
      %p152 = por %p150, %p151
      %p153 = scmp.ne.s32.totalorder %s144, %s145
      %p154 = scmp.eq.s32.totalorder %s23, 0
      %p155 = por %p153, %p154
      %p156 = scmp.ne.s32.totalorder %s144, %s145
      %p157 = scmp.eq.s32.totalorder %s24, 1
      %p158 = por %p156, %p157
      %p160 = scmp.ne.s32.totalorder %s145, %s159
      %p161 = scmp.eq.s32.totalorder %s24, 0
      %p162 = por %p160, %p161
      %s163 = ssub.s32 %s25, %s37
      %p164 = scmp.eq.s32.totalorder %s163, 0
      %s166 = sadd.s32 %s165, 1
      %s167 = scalar_select %p164, %s165, %s166
      %p170 = pneg %p164
      %p171 = scmp.eq.s32.totalorder %s18, 1
      %p172 = por %p170, %p171
      %p173 = scmp.ne.s32.totalorder %s165, %s168
      %p174 = scmp.eq.s32.totalorder %s18, 0
      %p175 = por %p173, %p174
      %p176 = scmp.ne.s32.totalorder %s165, %s168
      %p177 = scmp.eq.s32.totalorder %s23, 1
      %p178 = por %p176, %p177
      %p179 = scmp.ne.s32.totalorder %s168, %s169
      %p180 = scmp.eq.s32.totalorder %s23, 0
      %p181 = por %p179, %p180
      %p182 = scmp.ne.s32.totalorder %s168, %s169
      %p183 = scmp.eq.s32.totalorder %s24, 1
      %p184 = por %p182, %p183
      %p186 = scmp.ne.s32.totalorder %s169, %s185
      %p187 = scmp.eq.s32.totalorder %s24, 0
      %p188 = por %p186, %p187
      %p189 = scmp.le.s32.totalorder 1, %s18
      %p190 = scmp.lt.s32.totalorder %s18, 3
      %p191 = pnand %p189, %p190
      %p192 = pneg %p191
      // Predicated region
      $region9: #{tpu_custom_call.1} parent=5 // pred_check
        _
      $region10: #{tpu_custom_call.1} parent=5 // pred_check_branch
        %194 = sbr.rel (%p191) target = $region12
      $region11: #{tpu_custom_call.1} parent=5 // pred_region
        %s195 = ssub.s32 %s18, 1
        // Predicated region
        $region13: #{tpu_custom_call.1} parent=11 // pred_check
          %p196 = pneg %p82
        $region14: #{tpu_custom_call.1} parent=11 // pred_check_branch
          %198 = sbr.rel (%p196) target = $region16
        $region15: #{tpu_custom_call.1} parent=11 // pred_region
          %s200 = ssub.s32 2048, 2048
          %201 = vsyncadd [#allocation6], %s200
          %s202 = smul.addr %s28, 128
          %s203 = scalar_lea.hbm %s1, %s202
          %s204 = sshll.u32 [#allocation5], 4
          %s205 = int_to_ptr.vmem [resolvable:$true] %s204
          %210 = dma.hbm_to_vmem [thread:$0]  %s203, 2048, %s205, [#allocation6], 128, 128, 8
        $region16: #{tpu_custom_call.1} parent=11 // pred_fallthru
          _
        // Predicated region
        $region17: #{tpu_custom_call.1} parent=11 // pred_check
          %p211 = pneg %p108
        $region18: #{tpu_custom_call.1} parent=11 // pred_check_branch
          %213 = sbr.rel (%p211) target = $region20
        $region19: #{tpu_custom_call.1} parent=11 // pred_region
          %p214 = scmp.lt.s32.totalorder %s28, 0
          %s215 = scalar_select %p214, %s28, 0
          %s216 = scalar_lea.vmem %s2, %s215
        $region20: #{tpu_custom_call.1} parent=11 // pred_fallthru
          _
        // Predicated region
        $region21: #{tpu_custom_call.1} parent=11 // pred_check
          %p217 = pneg %p134
        $region22: #{tpu_custom_call.1} parent=11 // pred_check_branch
          %219 = sbr.rel (%p217) target = $region24
        $region23: #{tpu_custom_call.1} parent=11 // pred_region
          %s220 = smul.u32 16, %s28
          %s222 = ssub.s32 2048, 2048
          %223 = vsyncadd [#allocation6], %s222
          %s224 = smul.addr %s220, 128
          %s225 = scalar_lea.hbm %s3, %s224
          %s226 = sshll.u32 [#allocation7], 4
          %s227 = int_to_ptr.vmem [resolvable:$true] %s226
          %232 = dma.hbm_to_vmem [thread:$0]  %s225, 2048, %s227, [#allocation6], 128, 128, 8
        $region24: #{tpu_custom_call.1} parent=11 // pred_fallthru
          _
        // Predicated region
        $region25: #{tpu_custom_call.1} parent=11 // pred_check
          %p233 = pneg %p155
        $region26: #{tpu_custom_call.1} parent=11 // pred_check_branch
          %235 = sbr.rel (%p233) target = $region28
        $region27: #{tpu_custom_call.1} parent=11 // pred_region
          _
        $region28: #{tpu_custom_call.1} parent=11 // pred_fallthru
          _
      $region12: #{tpu_custom_call.1} parent=5 // pred_fallthru
        _
      %p236 = scmp.lt.s32.totalorder %s18, 2
      // Predicated region
      $region29: #{tpu_custom_call.1} parent=5 // pred_check
        %p237 = pneg %p236
      $region30: #{tpu_custom_call.1} parent=5 // pred_check_branch
        %239 = sbr.rel (%p237) target = $region32
      $region31: #{tpu_custom_call.1} parent=5 // pred_region
        // Predicated region
        $region33: #{tpu_custom_call.1} parent=31 // pred_check
          %p240 = pneg %p50
        $region34: #{tpu_custom_call.1} parent=31 // pred_check_branch
          %242 = sbr.rel (%p240) target = $region36
        $region35: #{tpu_custom_call.1} parent=31 // pred_region
          %s243 = sand.u32 %s40, 1
          %s244 = scalar_lea.sflag [#allocation3], %s243
          %s245 = sand.u32 %s40, 1
          %s246 = smul.addr %s245, 8
          %s247 = scalar_lea.vmem [#allocation2], %s246
          %s249 = ssub.s32 128, 128
          %250 = vsyncadd %s244, %s249
          %s251 = smul.addr %s25, 128
          %s252 = scalar_lea.hbm %s0, %s251
          %s254 = sshll.u32 %s247, 4
          %s255 = int_to_ptr.vmem [resolvable:$true] %s254
          %257 = dma.hbm_to_vmem [thread:$0]  %s252, 128, %s255, %s244
        $region36: #{tpu_custom_call.1} parent=31 // pred_fallthru
          _
      $region32: #{tpu_custom_call.1} parent=5 // pred_fallthru
        _
      %p258 = scmp.le.s32.totalorder 1, %s18
      %p259 = scmp.lt.s32.totalorder %s18, 3
      %p260 = pnand %p258, %p259
      %p261 = pneg %p260
      // Predicated region
      $region37: #{tpu_custom_call.1} parent=5 // pred_check
        _
      $region38: #{tpu_custom_call.1} parent=5 // pred_check_branch
        %263 = sbr.rel (%p260) target = $region40
      $region39: #{tpu_custom_call.1} parent=5 // pred_region
        %s264 = ssub.s32 %s18, 1
        %s265 = sand.u32 %s43, 1
        %s266 = scalar_lea.sflag [#allocation3], %s265
        %s267 = sand.u32 %s43, 1
        %s268 = smul.addr %s267, 8
        %s269 = scalar_lea.vmem [#allocation2], %s268
        // Predicated region
        $region41: #{tpu_custom_call.1} parent=39 // pred_check
          %p270 = pneg %p56
        $region42: #{tpu_custom_call.1} parent=39 // pred_check_branch
          %272 = sbr.rel (%p270) target = $region44
        $region43: #{tpu_custom_call.1} parent=39 // pred_region
          %273 = dma.done %s266, 128
        $region44: #{tpu_custom_call.1} parent=39 // pred_fallthru
          _
        // Predicated region
        $region45: #{tpu_custom_call.1} parent=39 // pred_check
          %p274 = pneg %p82
        $region46: #{tpu_custom_call.1} parent=39 // pred_check_branch
          %276 = sbr.rel (%p274) target = $region48
        $region47: #{tpu_custom_call.1} parent=39 // pred_region
          %277 = dma.done [#allocation6], 2048
        $region48: #{tpu_custom_call.1} parent=39 // pred_fallthru
          _
        // Predicated region
        $region49: #{tpu_custom_call.1} parent=39 // pred_check
          %p278 = pneg %p134
        $region50: #{tpu_custom_call.1} parent=39 // pred_check_branch
          %280 = sbr.rel (%p278) target = $region52
        $region51: #{tpu_custom_call.1} parent=39 // pred_region
          %281 = dma.done [#allocation6], 2048
        $region52: #{tpu_custom_call.1} parent=39 // pred_fallthru
          _
        %s282 = sand.u32 %s43, 1
        %s283 = scalar_lea.sflag [#allocation3], %s282
        %s284 = sand.u32 %s43, 1
        %s285 = smul.addr %s284, 8
        %s286 = scalar_lea.vmem [#allocation2], %s285
        %p287 = pneg %p56
        %p288 = pneg %p53
        %p289 = pneg %p82
        %p290 = pneg %p79
        %p291 = scmp.lt.s32.totalorder %s28, 0
        %s292 = scalar_select %p291, %s28, 0
        %s293 = scalar_lea.vmem %s2, %s292
        %p294 = pneg %p108
        %p295 = pneg %p105
        %p296 = pneg %p134
        %p297 = pneg %p131
        %p298 = pneg %p155
        %p299 = pneg %p152
        %p300 = pneg %p181
        %p301 = pneg %p178
        %s302 = sand.u32 %s168, 1
        %s303 = scalar_lea.sflag [#allocation4], %s302
        %s304 = sand.u32 %s168, 1
        %s305 = smul.addr %s304, 8
        %s306 = scalar_lea.vmem [#allocation8], %s305
        %p307 = scmp.lt.s32.totalorder %s28, 0
        %s308 = scalar_select %p307, %s28, 0
        %s309 = scalar_lea.vmem %s2, %s308
        %s310 = smul.u32 16, %s28
        %v311 = vld [vmem:[%s269] sm:$0xff]
        %v312 = vld [vmem:[#allocation5] sm:$0xff]
        %v313 = vld [vmem:[#allocation5 + $0x8] sm:$0xff]
        %v314 = vld [vmem:[#allocation5 + $0x10] sm:$0xff]
        %v315 = vld [vmem:[#allocation5 + $0x18] sm:$0xff]
        %v316 = vld [vmem:[#allocation5 + $0x20] sm:$0xff]
        %v317 = vld [vmem:[#allocation5 + $0x28] sm:$0xff]
        %v318 = vld [vmem:[#allocation5 + $0x30] sm:$0xff]
        %v319 = vld [vmem:[#allocation5 + $0x38] sm:$0xff]
        %v320 = vld [vmem:[#allocation5 + $0x40] sm:$0xff]
        %v321 = vld [vmem:[#allocation5 + $0x48] sm:$0xff]
        %v322 = vld [vmem:[#allocation5 + $0x50] sm:$0xff]
        %v323 = vld [vmem:[#allocation5 + $0x58] sm:$0xff]
        %v324 = vld [vmem:[#allocation5 + $0x60] sm:$0xff]
        %v325 = vld [vmem:[#allocation5 + $0x68] sm:$0xff]
        %v326 = vld [vmem:[#allocation5 + $0x70] sm:$0xff]
        %v327 = vld [vmem:[#allocation5 + $0x78] sm:$0xff]
        %v328 = vld [vmem:[%s309] sm:$0x1]
        %v330 = vlaneseq
        %v331 = vshrl.u32 %v330, 7
        %v332 = vsub.s32 0, %v331
        %v333 = vrot.slane %v328, %v332
        %335 = vmatprep.subr.mxu0 0.0
        %336 = vmatpush1.msra.mxu0 %v327
        %337 = vmatprep.subr.mxu0 0.0
        %338 = vmatpush1.msra.mxu0 %v326
        %339 = vmatprep.subr.mxu0 0.0
        %340 = vmatpush1.msra.mxu0 %v325
        %341 = vmatprep.subr.mxu0 0.0
        %342 = vmatpush1.msra.mxu0 %v324
        %343 = vmatprep.subr.mxu0 0.0
        %344 = vmatpush1.msra.mxu0 %v323
        %345 = vmatprep.subr.mxu0 0.0
        %346 = vmatpush1.msra.mxu0 %v322
        %347 = vmatprep.subr.mxu0 0.0
        %348 = vmatpush1.msra.mxu0 %v321
        %349 = vmatprep.subr.mxu0 0.0
        %350 = vmatpush1.msra.mxu0 %v320
        %351 = vmatprep.subr.mxu0 0.0
        %352 = vmatpush1.msra.mxu0 %v319
        %353 = vmatprep.subr.mxu0 0.0
        %354 = vmatpush1.msra.mxu0 %v318
        %355 = vmatprep.subr.mxu0 0.0
        %356 = vmatpush1.msra.mxu0 %v317
        %357 = vmatprep.subr.mxu0 0.0
        %358 = vmatpush1.msra.mxu0 %v316
        %359 = vmatprep.subr.mxu0 0.0
        %360 = vmatpush1.msra.mxu0 %v315
        %361 = vmatprep.subr.mxu0 0.0
        %362 = vmatpush1.msra.mxu0 %v314
        %363 = vmatprep.subr.mxu0 0.0
        %364 = vmatpush1.msra.mxu0 %v313
        %365 = vmatprep.subr.mxu0 0.0
        %366 = vmatpush1.msra.mxu0 %v312
        %367 = vmatprep.subr.mxu0 0.0
        %368 = vmatpush2.msra.mxu0 0.0
        %369 = vmatprep.subr.mxu0 0.0
        %370 = vmatpush2.msra.mxu0 0.0
        %371 = vmatprep.subr.mxu0 0.0
        %372 = vmatpush2.msra.mxu0 0.0
        %373 = vmatprep.subr.mxu0 0.0
        %374 = vmatpush2.msra.mxu0 0.0
        %375 = vmatprep.subr.mxu0 0.0
        %376 = vmatpush2.msra.mxu0 0.0
        %377 = vmatprep.subr.mxu0 0.0
        %378 = vmatpush2.msra.mxu0 0.0
        %379 = vmatprep.subr.mxu0 0.0
        %380 = vmatpush2.msra.mxu0 0.0
        %381 = vmatprep.subr.mxu0 0.0
        %382 = vmatpush2.msra.mxu0 0.0
        %383 = vmatprep.subr.mxu0 0.0
        %384 = vmatpush2.msra.mxu0 0.0
        %385 = vmatprep.subr.mxu0 0.0
        %386 = vmatpush2.msra.mxu0 0.0
        %387 = vmatprep.subr.mxu0 0.0
        %388 = vmatpush2.msra.mxu0 0.0
        %389 = vmatprep.subr.mxu0 0.0
        %390 = vmatpush2.msra.mxu0 0.0
        %391 = vmatprep.subr.mxu0 0.0
        %392 = vmatpush2.msra.mxu0 0.0
        %393 = vmatprep.subr.mxu0 0.0
        %394 = vmatpush2.msra.mxu0 0.0
        %395 = vmatprep.subr.mxu0 0.0
        %396 = vmatpush2.msra.mxu0 0.0
        %397 = vmatprep.subr.mxu0 0.0
        %398 = vmatpush2.msra.mxu0 0.0
        %399 = vmatprep.mubr.f32.mxu0 0.0
        %400 = vmatmul.mubr.f32.gmra.mxu0 %v311
        %v401 = vpop.f32.mrf.mxu0
        %v402 = vadd.f32 %v333, %v401
        %v403 = vpop.f32.mrf.mxu0
        %404 = vdwg.mxu0
        %v405 = vmul.f32 %v402, 0.5
        %v406 = vmul.f32 %v402, 0.70710677
        %v407 = verf.f32.pop %v406
        %v408 = vadd.f32 %v407, 1.0
        %v409 = vmul.f32 %v405, %v408
        %v410 = vld [vmem:[#allocation7] sm:$0xff]
        %v411 = vld [vmem:[#allocation7 + $0x8] sm:$0xff]
        %v412 = vld [vmem:[#allocation7 + $0x10] sm:$0xff]
        %v413 = vld [vmem:[#allocation7 + $0x18] sm:$0xff]
        %v414 = vld [vmem:[#allocation7 + $0x20] sm:$0xff]
        %v415 = vld [vmem:[#allocation7 + $0x28] sm:$0xff]
        %v416 = vld [vmem:[#allocation7 + $0x30] sm:$0xff]
        %v417 = vld [vmem:[#allocation7 + $0x38] sm:$0xff]
        %v418 = vld [vmem:[#allocation7 + $0x40] sm:$0xff]
        %v419 = vld [vmem:[#allocation7 + $0x48] sm:$0xff]
        %v420 = vld [vmem:[#allocation7 + $0x50] sm:$0xff]
        %v421 = vld [vmem:[#allocation7 + $0x58] sm:$0xff]
        %v422 = vld [vmem:[#allocation7 + $0x60] sm:$0xff]
        %v423 = vld [vmem:[#allocation7 + $0x68] sm:$0xff]
        %v424 = vld [vmem:[#allocation7 + $0x70] sm:$0xff]
        %v425 = vld [vmem:[#allocation7 + $0x78] sm:$0xff]
        %426 = vmatprep.subr.mxu0 0.0
        %427 = vmatpush1.msra.mxu0 %v425
        %428 = vmatprep.subr.mxu0 0.0
        %429 = vmatpush1.msra.mxu0 %v424
        %430 = vmatprep.subr.mxu0 0.0
        %431 = vmatpush1.msra.mxu0 %v423
        %432 = vmatprep.subr.mxu0 0.0
        %433 = vmatpush1.msra.mxu0 %v422
        %434 = vmatprep.subr.mxu0 0.0
        %435 = vmatpush1.msra.mxu0 %v421
        %436 = vmatprep.subr.mxu0 0.0
        %437 = vmatpush1.msra.mxu0 %v420
        %438 = vmatprep.subr.mxu0 0.0
        %439 = vmatpush1.msra.mxu0 %v419
        %440 = vmatprep.subr.mxu0 0.0
        %441 = vmatpush1.msra.mxu0 %v418
        %442 = vmatprep.subr.mxu0 0.0
        %443 = vmatpush1.msra.mxu0 %v417
        %444 = vmatprep.subr.mxu0 0.0
        %445 = vmatpush1.msra.mxu0 %v416
        %446 = vmatprep.subr.mxu0 0.0
        %447 = vmatpush1.msra.mxu0 %v415
        %448 = vmatprep.subr.mxu0 0.0
        %449 = vmatpush1.msra.mxu0 %v414
        %450 = vmatprep.subr.mxu0 0.0
        %451 = vmatpush1.msra.mxu0 %v413
        %452 = vmatprep.subr.mxu0 0.0
        %453 = vmatpush1.msra.mxu0 %v412
        %454 = vmatprep.subr.mxu0 0.0
        %455 = vmatpush1.msra.mxu0 %v411
        %456 = vmatprep.subr.mxu0 0.0
        %457 = vmatpush1.msra.mxu0 %v410
        %458 = vmatprep.subr.mxu0 0.0
        %459 = vmatpush2.msra.mxu0 0.0
        %460 = vmatprep.subr.mxu0 0.0
        %461 = vmatpush2.msra.mxu0 0.0
        %462 = vmatprep.subr.mxu0 0.0
        %463 = vmatpush2.msra.mxu0 0.0
        %464 = vmatprep.subr.mxu0 0.0
        %465 = vmatpush2.msra.mxu0 0.0
        %466 = vmatprep.subr.mxu0 0.0
        %467 = vmatpush2.msra.mxu0 0.0
        %468 = vmatprep.subr.mxu0 0.0
        %469 = vmatpush2.msra.mxu0 0.0
        %470 = vmatprep.subr.mxu0 0.0
        %471 = vmatpush2.msra.mxu0 0.0
        %472 = vmatprep.subr.mxu0 0.0
        %473 = vmatpush2.msra.mxu0 0.0
        %474 = vmatprep.subr.mxu0 0.0
        %475 = vmatpush2.msra.mxu0 0.0
        %476 = vmatprep.subr.mxu0 0.0
        %477 = vmatpush2.msra.mxu0 0.0
        %478 = vmatprep.subr.mxu0 0.0
        %479 = vmatpush2.msra.mxu0 0.0
        %480 = vmatprep.subr.mxu0 0.0
        %481 = vmatpush2.msra.mxu0 0.0
        %482 = vmatprep.subr.mxu0 0.0
        %483 = vmatpush2.msra.mxu0 0.0
        %484 = vmatprep.subr.mxu0 0.0
        %485 = vmatpush2.msra.mxu0 0.0
        %486 = vmatprep.subr.mxu0 0.0
        %487 = vmatpush2.msra.mxu0 0.0
        %488 = vmatprep.subr.mxu0 0.0
        %489 = vmatpush2.msra.mxu0 0.0
        %490 = vmatprep.mubr.f32.mxu0 0.0
        %491 = vmatmul.mubr.f32.gmra.mxu0 %v409
        %v492 = vpop.f32.mrf.mxu0
        %v493 = vadd.f32 0.0, %v492
        %v494 = vpop.f32.mrf.mxu0
        %495 = vdwg.mxu0
        %p496 = scmp.eq.s32.totalorder %s28, 0
        // Predicated region
        $region53: #{tpu_custom_call.1} parent=39 // pred_check
          %p497 = pneg %p496
        $region54: #{tpu_custom_call.1} parent=39 // pred_check_branch
          %499 = sbr.rel (%p497) target = $region56
        $region55: #{tpu_custom_call.1} parent=39 // pred_region
          %v500 = vld [vmem:[%s4] sm:$0x1]
          %v502 = vlaneseq
          %v503 = vshrl.u32 %v502, 7
          %v504 = vsub.s32 0, %v503
          %v505 = vrot.slane %v500, %v504
          %v507 = vadd.f32 %v493, %v505
          %508 = vst [vmem:[%s306] sm:$0xff] %v507
        $region56: #{tpu_custom_call.1} parent=39 // pred_fallthru
          _
        %p509 = scmp.gt.s32.totalorder %s28, 0
        // Predicated region
        $region57: #{tpu_custom_call.1} parent=39 // pred_check
          %p510 = pneg %p509
        $region58: #{tpu_custom_call.1} parent=39 // pred_check_branch
          %512 = sbr.rel (%p510) target = $region60
        $region59: #{tpu_custom_call.1} parent=39 // pred_region
          %v513 = vld [vmem:[%s306] sm:$0xff]
          %v514 = vadd.f32 %v513, %v493
          %515 = vst [vmem:[%s306] sm:$0xff] %v514
        $region60: #{tpu_custom_call.1} parent=39 // pred_fallthru
          _
        %s516 = sand.u32 %s168, 1
        %s517 = scalar_lea.sflag [#allocation4], %s516
        %s518 = sand.u32 %s168, 1
        %s519 = smul.addr %s518, 8
        %s520 = scalar_lea.vmem [#allocation8], %s519
        // Predicated region
        $region61: #{tpu_custom_call.1} parent=39 // pred_check
          %p521 = pneg %p178
        $region62: #{tpu_custom_call.1} parent=39 // pred_check_branch
          %523 = sbr.rel (%p521) target = $region64
        $region63: #{tpu_custom_call.1} parent=39 // pred_region
          %s525 = ssub.s32 128, 128
          %526 = vsyncadd %s517, %s525
          %s527 = smul.addr %s27, 128
          %s528 = scalar_lea.hbm %s5, %s527
          %s530 = sshll.u32 %s520, 4
          %s531 = int_to_ptr.vmem [resolvable:$true] %s530
          %533 = dma.vmem_to_hbm [thread:$0]  %s531, 128, %s528, %s517
        $region64: #{tpu_custom_call.1} parent=39 // pred_fallthru
          _
      $region40: #{tpu_custom_call.1} parent=5 // pred_fallthru
        _
      %p534 = scmp.le.s32.totalorder 2, %s18
      // Predicated region
      $region65: #{tpu_custom_call.1} parent=5 // pred_check
        %p535 = pneg %p534
      $region66: #{tpu_custom_call.1} parent=5 // pred_check_branch
        %537 = sbr.rel (%p535) target = $region68
      $region67: #{tpu_custom_call.1} parent=5 // pred_region
        %s538 = ssub.s32 %s18, 2
        // Predicated region
        $region69: #{tpu_custom_call.1} parent=67 // pred_check
          %p539 = pneg %p184
        $region70: #{tpu_custom_call.1} parent=67 // pred_check_branch
          %541 = sbr.rel (%p539) target = $region72
        $region71: #{tpu_custom_call.1} parent=67 // pred_region
          %s542 = sand.u32 %s169, 1
          %s543 = scalar_lea.sflag [#allocation4], %s542
          %s544 = sand.u32 %s169, 1
          %s545 = smul.addr %s544, 8
          %s546 = scalar_lea.vmem [#allocation8], %s545
          %547 = dma.done %s543, 128
        $region72: #{tpu_custom_call.1} parent=67 // pred_fallthru
          _
      $region68: #{tpu_custom_call.1} parent=5 // pred_fallthru
        _
    $region6: #{tpu_custom_call.1} parent=1 // loop_footer
      %s22 = sadd.s32 1, %s18
    $region7: #{tpu_custom_call.1} parent=1 // loop_footer_branch
      %17 = sbr.rel target = $region3
    $region8: #{tpu_custom_call.1} parent=1 // loop_exit
      _
    %548 = vsyncpa [#allocation3], 1
    %s549 = scalar_lea.sflag [#allocation3], 1
    %550 = vsyncpa %s549, 1
    %551 = vsyncpa [#allocation6], 1
    %552 = vsyncpa [#allocation4], 1
    %s553 = scalar_lea.sflag [#allocation4], 1
    %554 = vsyncpa %s553, 1

</llo_original>
